<compile_context>
chip_gen: v7x
topology: tpu7x:2x2x1
jax: 0.10.0
libtpu: 0.0.40
codegen_flags: <defaults>
</compile_context>

<pallas_src>
import functools
import math

import jax
import jax.numpy as jnp
from jax.experimental import pallas as pl
from jax.experimental.pallas import tpu as pltpu


# ----------------------------- Pallas kernel --------------------------------
def _gather_kernel(ids_ref, w_hbm, keep_ref, o_ref, row_buf, sems, *, block_tokens):
    # ids_ref : SMEM (T_pad,) int32   local (already-clamped) row ids  [scalar prefetch]
    # w_hbm   : HBM  (V, D)           embedding table (memory_space=pl.ANY)
    # keep_ref: VMEM (block_tokens,1) 1.0 = keep row, 0.0 = out-of-range row
    # o_ref   : VMEM (block_tokens,D) output block
    # row_buf : VMEM (block_tokens,D) gather scratch
    # sems    : DMA semaphores, shape (block_tokens,)
    base = pl.program_id(0) * block_tokens

    # Issue all row DMAs for this token block -- they run concurrently.
    for t in range(block_tokens):
        row = ids_ref[base + t]
        pltpu.make_async_copy(
            w_hbm.at[pl.ds(row, 1), :],
            row_buf.at[pl.ds(t, 1), :],
            sems.at[t],
        ).start()

    # Wait for all of them (descriptor reconstruction only needs matching shapes).
    for t in range(block_tokens):
        pltpu.make_async_copy(
            w_hbm.at[pl.ds(0, 1), :],
            row_buf.at[pl.ds(t, 1), :],
            sems.at[t],
        ).wait()

    # Vocab-range masking + single lane-dense store of the whole block.
    o_ref[...] = row_buf[...] * keep_ref[...]


# ------------------------------- wrapper -------------------------------------
def vocab_parallel_embedding(
    ids,
    weight,
    *,
    vocab_start_index=0,
    vocab_end_index=None,
    block_tokens=8,
):
    """output[..., :] = weight_local[ids[...] - vocab_start, :], zeroed where
    ids fall outside [vocab_start_index, vocab_end_index)."""
    v_local, embed_dim = weight.shape
    if vocab_end_index is None:
        vocab_end_index = vocab_start_index + v_local

    lead_shape = ids.shape
    num_tokens = int(math.prod(lead_shape)) if lead_shape else 1
    ids_flat = ids.reshape(num_tokens).astype(jnp.int32)

    # Same masking logic as the PyTorch forward (identity at world_size == 1).
    input_mask = (ids_flat < vocab_start_index) | (ids_flat >= vocab_end_index)
    local_ids = jnp.where(input_mask, 0, ids_flat - vocab_start_index).astype(jnp.int32)
    keep = jnp.where(input_mask, 0, 1).astype(weight.dtype).reshape(num_tokens, 1)

    # Pad only the tiny per-token id/mask arrays (never the embedding table).
    tb = block_tokens
    t_pad = ((num_tokens + tb - 1) // tb) * tb
    if t_pad != num_tokens:
        pad = t_pad - num_tokens
        local_ids = jnp.pad(local_ids, (0, pad))
        keep = jnp.pad(keep, ((0, pad), (0, 0)))

    grid = (t_pad // tb,)
    kernel = functools.partial(_gather_kernel, block_tokens=tb)

    out = pl.pallas_call(
        kernel,
        out_shape=jax.ShapeDtypeStruct((t_pad, embed_dim), weight.dtype),
        grid_spec=pltpu.PrefetchScalarGridSpec(
            num_scalar_prefetch=1,  # local_ids -> SMEM
            grid=grid,
            in_specs=[
                pl.BlockSpec(memory_space=pl.ANY),                  # weight stays in HBM
                pl.BlockSpec((tb, 1), lambda i, ids: (i, 0)),        # keep mask block
            ],
            out_specs=pl.BlockSpec((tb, embed_dim), lambda i, ids: (i, 0)),
            scratch_shapes=[
                pltpu.VMEM((tb, embed_dim), weight.dtype),           # gather buffer
                pltpu.SemaphoreType.DMA((tb,)),                      # one sem per row DMA
            ],
        ),
        compiler_params=pltpu.CompilerParams(
            dimension_semantics=("parallel",),
        ),
    )(local_ids, weight, keep)

    if t_pad != num_tokens:
        out = out[:num_tokens]
    return out.reshape(*lead_shape, embed_dim)


# ----------------------- deterministic parameter init -----------------------
def init_params(key, num_embeddings, embedding_dim, dtype=jnp.float32):
    # _initialize_affine_weight at world_size == 1: xavier_uniform_ on the full
    # (num_embeddings, embedding_dim) table.  (padding_idx row is NOT zeroed by
    # VocabParallelEmbedding, matching the PyTorch module.)
    fan_in, fan_out = embedding_dim, num_embeddings
    limit = math.sqrt(6.0 / (fan_in + fan_out))
    weight = jax.random.uniform(
        key, (num_embeddings, embedding_dim), dtype=dtype, minval=-limit, maxval=limit
    )
    return weight


# ---------------------------------- main -------------------------------------
if __name__ == "__main__":
    key = jax.random.PRNGKey(0)

    batch, seq = 2, 8
    num_embeddings, embedding_dim = 64, 128   # lane-dense 128-wide rows
    padding_idx = 1                           # forward-pass no-op (grad-only in torch)

    kids, kw = jax.random.split(key)
    ids = jax.random.randint(kids, (batch, seq), 0, num_embeddings, dtype=jnp.int32)
    weight = init_params(kw, num_embeddings, embedding_dim)

    y = vocab_parallel_embedding(ids, weight)
    y = jax.block_until_ready(y)

    # Reference (plain JAX) -- same masking + gather semantics as the module.
    mask = (ids < 0) | (ids >= num_embeddings)
    safe_ids = jnp.where(mask, 0, ids)
    y_ref = jnp.where(mask[..., None], 0.0, weight[safe_ids])

    assert y.shape == (batch, seq, embedding_dim)
    assert jnp.allclose(y, y_ref, atol=1e-6, rtol=1e-6)

    print("KERNEL_OK")
</pallas_src>

<mosaic_0001>
module attributes {stable_mosaic.version = 11 : i64} {
  func.func @_gather_kernel(%arg0: i32, %arg1: memref<16xi32, #tpu.memory_space<smem>>, %arg2: memref<64x128xf32, #tpu.memory_space<any>>, %arg3: memref<8x1xf32, #tpu.memory_space<vmem>>, %arg4: memref<8x128xf32, #tpu.memory_space<vmem>>, %arg5: memref<8x128xf32, #tpu.memory_space<vmem>>, %arg6: memref<8x!tpu.dma_semaphore, #tpu.memory_space<semaphore_mem>>) attributes {dimension_semantics = [#tpu.dimension_semantics<parallel>], iteration_bounds = array<i64: 2>, scalar_prefetch = 1 : i64, scratch_operands = 2 : i64, tpu.core_type = #tpu.core_type<tc>, window_params = [{}, {transform_indices = @transform_1, window_bounds = array<i64: 8, 1>}, {transform_indices = @transform_2, window_bounds = array<i64: 8, 128>}]} {
    %c8_i32 = arith.constant 8 : i32
    %0 = arith.muli %arg0, %c8_i32 : i32
    %c0_i32 = arith.constant 0 : i32
    %1 = arith.addi %0, %c0_i32 : i32
    %2 = arith.index_cast %1 : i32 to index
    %3 = memref.load %arg1[%2] : memref<16xi32, #tpu.memory_space<smem>>
    %c0_i32_0 = arith.constant 0 : i32
    %c0_i32_1 = arith.constant 0 : i32
    %4 = tpu.memref_slice %arg2[%3, %c0_i32_1] : memref<64x128xf32, #tpu.memory_space<any>> -> memref<1x128xf32, #tpu.memory_space<any>>
    %c0_i32_2 = arith.constant 0 : i32
    %c0_i32_3 = arith.constant 0 : i32
    %5 = tpu.memref_slice %arg5[%c0_i32_2, %c0_i32_3] : memref<8x128xf32, #tpu.memory_space<vmem>> -> memref<1x128xf32, #tpu.memory_space<vmem>>
    %6 = tpu.memref_slice %arg6[%c0_i32_0] : memref<8x!tpu.dma_semaphore, #tpu.memory_space<semaphore_mem>> -> memref<1x!tpu.dma_semaphore, #tpu.memory_space<semaphore_mem>>
    %7 = tpu.memref_squeeze %6 : memref<1x!tpu.dma_semaphore, #tpu.memory_space<semaphore_mem>> -> memref<!tpu.dma_semaphore, #tpu.memory_space<semaphore_mem>>
    tpu.enqueue_dma source(%4 : memref<1x128xf32, #tpu.memory_space<any>>) target(%5 : memref<1x128xf32, #tpu.memory_space<vmem>>) target_semaphore(%7 : memref<!tpu.dma_semaphore, #tpu.memory_space<semaphore_mem>>)
    %c1_i32 = arith.constant 1 : i32
    %8 = arith.addi %0, %c1_i32 : i32
    %9 = arith.index_cast %8 : i32 to index
    %10 = memref.load %arg1[%9] : memref<16xi32, #tpu.memory_space<smem>>
    %c1_i32_4 = arith.constant 1 : i32
    %c0_i32_5 = arith.constant 0 : i32
    %11 = tpu.memref_slice %arg2[%10, %c0_i32_5] : memref<64x128xf32, #tpu.memory_space<any>> -> memref<1x128xf32, #tpu.memory_space<any>>
    %c1_i32_6 = arith.constant 1 : i32
    %c0_i32_7 = arith.constant 0 : i32
    %12 = tpu.memref_slice %arg5[%c1_i32_6, %c0_i32_7] : memref<8x128xf32, #tpu.memory_space<vmem>> -> memref<1x128xf32, #tpu.memory_space<vmem>>
    %13 = tpu.memref_slice %arg6[%c1_i32_4] : memref<8x!tpu.dma_semaphore, #tpu.memory_space<semaphore_mem>> -> memref<1x!tpu.dma_semaphore, #tpu.memory_space<semaphore_mem>>
    %14 = tpu.memref_squeeze %13 : memref<1x!tpu.dma_semaphore, #tpu.memory_space<semaphore_mem>> -> memref<!tpu.dma_semaphore, #tpu.memory_space<semaphore_mem>>
    tpu.enqueue_dma source(%11 : memref<1x128xf32, #tpu.memory_space<any>>) target(%12 : memref<1x128xf32, #tpu.memory_space<vmem>>) target_semaphore(%14 : memref<!tpu.dma_semaphore, #tpu.memory_space<semaphore_mem>>)
    %c2_i32 = arith.constant 2 : i32
    %15 = arith.addi %0, %c2_i32 : i32
    %16 = arith.index_cast %15 : i32 to index
    %17 = memref.load %arg1[%16] : memref<16xi32, #tpu.memory_space<smem>>
    %c2_i32_8 = arith.constant 2 : i32
    %c0_i32_9 = arith.constant 0 : i32
    %18 = tpu.memref_slice %arg2[%17, %c0_i32_9] : memref<64x128xf32, #tpu.memory_space<any>> -> memref<1x128xf32, #tpu.memory_space<any>>
    %c2_i32_10 = arith.constant 2 : i32
    %c0_i32_11 = arith.constant 0 : i32
    %19 = tpu.memref_slice %arg5[%c2_i32_10, %c0_i32_11] : memref<8x128xf32, #tpu.memory_space<vmem>> -> memref<1x128xf32, #tpu.memory_space<vmem>>
    %20 = tpu.memref_slice %arg6[%c2_i32_8] : memref<8x!tpu.dma_semaphore, #tpu.memory_space<semaphore_mem>> -> memref<1x!tpu.dma_semaphore, #tpu.memory_space<semaphore_mem>>
    %21 = tpu.memref_squeeze %20 : memref<1x!tpu.dma_semaphore, #tpu.memory_space<semaphore_mem>> -> memref<!tpu.dma_semaphore, #tpu.memory_space<semaphore_mem>>
    tpu.enqueue_dma source(%18 : memref<1x128xf32, #tpu.memory_space<any>>) target(%19 : memref<1x128xf32, #tpu.memory_space<vmem>>) target_semaphore(%21 : memref<!tpu.dma_semaphore, #tpu.memory_space<semaphore_mem>>)
    %c3_i32 = arith.constant 3 : i32
    %22 = arith.addi %0, %c3_i32 : i32
    %23 = arith.index_cast %22 : i32 to index
    %24 = memref.load %arg1[%23] : memref<16xi32, #tpu.memory_space<smem>>
    %c3_i32_12 = arith.constant 3 : i32
    %c0_i32_13 = arith.constant 0 : i32
    %25 = tpu.memref_slice %arg2[%24, %c0_i32_13] : memref<64x128xf32, #tpu.memory_space<any>> -> memref<1x128xf32, #tpu.memory_space<any>>
    %c3_i32_14 = arith.constant 3 : i32
    %c0_i32_15 = arith.constant 0 : i32
    %26 = tpu.memref_slice %arg5[%c3_i32_14, %c0_i32_15] : memref<8x128xf32, #tpu.memory_space<vmem>> -> memref<1x128xf32, #tpu.memory_space<vmem>>
    %27 = tpu.memref_slice %arg6[%c3_i32_12] : memref<8x!tpu.dma_semaphore, #tpu.memory_space<semaphore_mem>> -> memref<1x!tpu.dma_semaphore, #tpu.memory_space<semaphore_mem>>
    %28 = tpu.memref_squeeze %27 : memref<1x!tpu.dma_semaphore, #tpu.memory_space<semaphore_mem>> -> memref<!tpu.dma_semaphore, #tpu.memory_space<semaphore_mem>>
    tpu.enqueue_dma source(%25 : memref<1x128xf32, #tpu.memory_space<any>>) target(%26 : memref<1x128xf32, #tpu.memory_space<vmem>>) target_semaphore(%28 : memref<!tpu.dma_semaphore, #tpu.memory_space<semaphore_mem>>)
    %c4_i32 = arith.constant 4 : i32
    %29 = arith.addi %0, %c4_i32 : i32
    %30 = arith.index_cast %29 : i32 to index
    %31 = memref.load %arg1[%30] : memref<16xi32, #tpu.memory_space<smem>>
    %c4_i32_16 = arith.constant 4 : i32
    %c0_i32_17 = arith.constant 0 : i32
    %32 = tpu.memref_slice %arg2[%31, %c0_i32_17] : memref<64x128xf32, #tpu.memory_space<any>> -> memref<1x128xf32, #tpu.memory_space<any>>
    %c4_i32_18 = arith.constant 4 : i32
    %c0_i32_19 = arith.constant 0 : i32
    %33 = tpu.memref_slice %arg5[%c4_i32_18, %c0_i32_19] : memref<8x128xf32, #tpu.memory_space<vmem>> -> memref<1x128xf32, #tpu.memory_space<vmem>>
    %34 = tpu.memref_slice %arg6[%c4_i32_16] : memref<8x!tpu.dma_semaphore, #tpu.memory_space<semaphore_mem>> -> memref<1x!tpu.dma_semaphore, #tpu.memory_space<semaphore_mem>>
    %35 = tpu.memref_squeeze %34 : memref<1x!tpu.dma_semaphore, #tpu.memory_space<semaphore_mem>> -> memref<!tpu.dma_semaphore, #tpu.memory_space<semaphore_mem>>
    tpu.enqueue_dma source(%32 : memref<1x128xf32, #tpu.memory_space<any>>) target(%33 : memref<1x128xf32, #tpu.memory_space<vmem>>) target_semaphore(%35 : memref<!tpu.dma_semaphore, #tpu.memory_space<semaphore_mem>>)
    %c5_i32 = arith.constant 5 : i32
    %36 = arith.addi %0, %c5_i32 : i32
    %37 = arith.index_cast %36 : i32 to index
    %38 = memref.load %arg1[%37] : memref<16xi32, #tpu.memory_space<smem>>
    %c5_i32_20 = arith.constant 5 : i32
    %c0_i32_21 = arith.constant 0 : i32
    %39 = tpu.memref_slice %arg2[%38, %c0_i32_21] : memref<64x128xf32, #tpu.memory_space<any>> -> memref<1x128xf32, #tpu.memory_space<any>>
    %c5_i32_22 = arith.constant 5 : i32
    %c0_i32_23 = arith.constant 0 : i32
    %40 = tpu.memref_slice %arg5[%c5_i32_22, %c0_i32_23] : memref<8x128xf32, #tpu.memory_space<vmem>> -> memref<1x128xf32, #tpu.memory_space<vmem>>
    %41 = tpu.memref_slice %arg6[%c5_i32_20] : memref<8x!tpu.dma_semaphore, #tpu.memory_space<semaphore_mem>> -> memref<1x!tpu.dma_semaphore, #tpu.memory_space<semaphore_mem>>
    %42 = tpu.memref_squeeze %41 : memref<1x!tpu.dma_semaphore, #tpu.memory_space<semaphore_mem>> -> memref<!tpu.dma_semaphore, #tpu.memory_space<semaphore_mem>>
    tpu.enqueue_dma source(%39 : memref<1x128xf32, #tpu.memory_space<any>>) target(%40 : memref<1x128xf32, #tpu.memory_space<vmem>>) target_semaphore(%42 : memref<!tpu.dma_semaphore, #tpu.memory_space<semaphore_mem>>)
    %c6_i32 = arith.constant 6 : i32
    %43 = arith.addi %0, %c6_i32 : i32
    %44 = arith.index_cast %43 : i32 to index
    %45 = memref.load %arg1[%44] : memref<16xi32, #tpu.memory_space<smem>>
    %c6_i32_24 = arith.constant 6 : i32
    %c0_i32_25 = arith.constant 0 : i32
    %46 = tpu.memref_slice %arg2[%45, %c0_i32_25] : memref<64x128xf32, #tpu.memory_space<any>> -> memref<1x128xf32, #tpu.memory_space<any>>
    %c6_i32_26 = arith.constant 6 : i32
    %c0_i32_27 = arith.constant 0 : i32
    %47 = tpu.memref_slice %arg5[%c6_i32_26, %c0_i32_27] : memref<8x128xf32, #tpu.memory_space<vmem>> -> memref<1x128xf32, #tpu.memory_space<vmem>>
    %48 = tpu.memref_slice %arg6[%c6_i32_24] : memref<8x!tpu.dma_semaphore, #tpu.memory_space<semaphore_mem>> -> memref<1x!tpu.dma_semaphore, #tpu.memory_space<semaphore_mem>>
    %49 = tpu.memref_squeeze %48 : memref<1x!tpu.dma_semaphore, #tpu.memory_space<semaphore_mem>> -> memref<!tpu.dma_semaphore, #tpu.memory_space<semaphore_mem>>
    tpu.enqueue_dma source(%46 : memref<1x128xf32, #tpu.memory_space<any>>) target(%47 : memref<1x128xf32, #tpu.memory_space<vmem>>) target_semaphore(%49 : memref<!tpu.dma_semaphore, #tpu.memory_space<semaphore_mem>>)
    %c7_i32 = arith.constant 7 : i32
    %50 = arith.addi %0, %c7_i32 : i32
    %51 = arith.index_cast %50 : i32 to index
    %52 = memref.load %arg1[%51] : memref<16xi32, #tpu.memory_space<smem>>
    %c7_i32_28 = arith.constant 7 : i32
    %c0_i32_29 = arith.constant 0 : i32
    %53 = tpu.memref_slice %arg2[%52, %c0_i32_29] : memref<64x128xf32, #tpu.memory_space<any>> -> memref<1x128xf32, #tpu.memory_space<any>>
    %c7_i32_30 = arith.constant 7 : i32
    %c0_i32_31 = arith.constant 0 : i32
    %54 = tpu.memref_slice %arg5[%c7_i32_30, %c0_i32_31] : memref<8x128xf32, #tpu.memory_space<vmem>> -> memref<1x128xf32, #tpu.memory_space<vmem>>
    %55 = tpu.memref_slice %arg6[%c7_i32_28] : memref<8x!tpu.dma_semaphore, #tpu.memory_space<semaphore_mem>> -> memref<1x!tpu.dma_semaphore, #tpu.memory_space<semaphore_mem>>
    %56 = tpu.memref_squeeze %55 : memref<1x!tpu.dma_semaphore, #tpu.memory_space<semaphore_mem>> -> memref<!tpu.dma_semaphore, #tpu.memory_space<semaphore_mem>>
    tpu.enqueue_dma source(%53 : memref<1x128xf32, #tpu.memory_space<any>>) target(%54 : memref<1x128xf32, #tpu.memory_space<vmem>>) target_semaphore(%56 : memref<!tpu.dma_semaphore, #tpu.memory_space<semaphore_mem>>)
    %c0_i32_32 = arith.constant 0 : i32
    %c0_i32_33 = arith.constant 0 : i32
    %c0_i32_34 = arith.constant 0 : i32
    %57 = tpu.memref_slice %arg2[%c0_i32_33, %c0_i32_34] : memref<64x128xf32, #tpu.memory_space<any>> -> memref<1x128xf32, #tpu.memory_space<any>>
    %c0_i32_35 = arith.constant 0 : i32
    %c0_i32_36 = arith.constant 0 : i32
    %58 = tpu.memref_slice %arg5[%c0_i32_35, %c0_i32_36] : memref<8x128xf32, #tpu.memory_space<vmem>> -> memref<1x128xf32, #tpu.memory_space<vmem>>
    %59 = tpu.memref_slice %arg6[%c0_i32_32] : memref<8x!tpu.dma_semaphore, #tpu.memory_space<semaphore_mem>> -> memref<1x!tpu.dma_semaphore, #tpu.memory_space<semaphore_mem>>
    %60 = tpu.memref_squeeze %59 : memref<1x!tpu.dma_semaphore, #tpu.memory_space<semaphore_mem>> -> memref<!tpu.dma_semaphore, #tpu.memory_space<semaphore_mem>>
    tpu.wait_dma2 semaphore(%60 : memref<!tpu.dma_semaphore, #tpu.memory_space<semaphore_mem>>) src(%57 : memref<1x128xf32, #tpu.memory_space<any>>) dst(%58 : memref<1x128xf32, #tpu.memory_space<vmem>>)
    %c1_i32_37 = arith.constant 1 : i32
    %c0_i32_38 = arith.constant 0 : i32
    %c0_i32_39 = arith.constant 0 : i32
    %61 = tpu.memref_slice %arg2[%c0_i32_38, %c0_i32_39] : memref<64x128xf32, #tpu.memory_space<any>> -> memref<1x128xf32, #tpu.memory_space<any>>
    %c1_i32_40 = arith.constant 1 : i32
    %c0_i32_41 = arith.constant 0 : i32
    %62 = tpu.memref_slice %arg5[%c1_i32_40, %c0_i32_41] : memref<8x128xf32, #tpu.memory_space<vmem>> -> memref<1x128xf32, #tpu.memory_space<vmem>>
    %63 = tpu.memref_slice %arg6[%c1_i32_37] : memref<8x!tpu.dma_semaphore, #tpu.memory_space<semaphore_mem>> -> memref<1x!tpu.dma_semaphore, #tpu.memory_space<semaphore_mem>>
    %64 = tpu.memref_squeeze %63 : memref<1x!tpu.dma_semaphore, #tpu.memory_space<semaphore_mem>> -> memref<!tpu.dma_semaphore, #tpu.memory_space<semaphore_mem>>
    tpu.wait_dma2 semaphore(%64 : memref<!tpu.dma_semaphore, #tpu.memory_space<semaphore_mem>>) src(%61 : memref<1x128xf32, #tpu.memory_space<any>>) dst(%62 : memref<1x128xf32, #tpu.memory_space<vmem>>)
    %c2_i32_42 = arith.constant 2 : i32
    %c0_i32_43 = arith.constant 0 : i32
    %c0_i32_44 = arith.constant 0 : i32
    %65 = tpu.memref_slice %arg2[%c0_i32_43, %c0_i32_44] : memref<64x128xf32, #tpu.memory_space<any>> -> memref<1x128xf32, #tpu.memory_space<any>>
    %c2_i32_45 = arith.constant 2 : i32
    %c0_i32_46 = arith.constant 0 : i32
    %66 = tpu.memref_slice %arg5[%c2_i32_45, %c0_i32_46] : memref<8x128xf32, #tpu.memory_space<vmem>> -> memref<1x128xf32, #tpu.memory_space<vmem>>
    %67 = tpu.memref_slice %arg6[%c2_i32_42] : memref<8x!tpu.dma_semaphore, #tpu.memory_space<semaphore_mem>> -> memref<1x!tpu.dma_semaphore, #tpu.memory_space<semaphore_mem>>
    %68 = tpu.memref_squeeze %67 : memref<1x!tpu.dma_semaphore, #tpu.memory_space<semaphore_mem>> -> memref<!tpu.dma_semaphore, #tpu.memory_space<semaphore_mem>>
    tpu.wait_dma2 semaphore(%68 : memref<!tpu.dma_semaphore, #tpu.memory_space<semaphore_mem>>) src(%65 : memref<1x128xf32, #tpu.memory_space<any>>) dst(%66 : memref<1x128xf32, #tpu.memory_space<vmem>>)
    %c3_i32_47 = arith.constant 3 : i32
    %c0_i32_48 = arith.constant 0 : i32
    %c0_i32_49 = arith.constant 0 : i32
    %69 = tpu.memref_slice %arg2[%c0_i32_48, %c0_i32_49] : memref<64x128xf32, #tpu.memory_space<any>> -> memref<1x128xf32, #tpu.memory_space<any>>
    %c3_i32_50 = arith.constant 3 : i32
    %c0_i32_51 = arith.constant 0 : i32
    %70 = tpu.memref_slice %arg5[%c3_i32_50, %c0_i32_51] : memref<8x128xf32, #tpu.memory_space<vmem>> -> memref<1x128xf32, #tpu.memory_space<vmem>>
    %71 = tpu.memref_slice %arg6[%c3_i32_47] : memref<8x!tpu.dma_semaphore, #tpu.memory_space<semaphore_mem>> -> memref<1x!tpu.dma_semaphore, #tpu.memory_space<semaphore_mem>>
    %72 = tpu.memref_squeeze %71 : memref<1x!tpu.dma_semaphore, #tpu.memory_space<semaphore_mem>> -> memref<!tpu.dma_semaphore, #tpu.memory_space<semaphore_mem>>
    tpu.wait_dma2 semaphore(%72 : memref<!tpu.dma_semaphore, #tpu.memory_space<semaphore_mem>>) src(%69 : memref<1x128xf32, #tpu.memory_space<any>>) dst(%70 : memref<1x128xf32, #tpu.memory_space<vmem>>)
    %c4_i32_52 = arith.constant 4 : i32
    %c0_i32_53 = arith.constant 0 : i32
    %c0_i32_54 = arith.constant 0 : i32
    %73 = tpu.memref_slice %arg2[%c0_i32_53, %c0_i32_54] : memref<64x128xf32, #tpu.memory_space<any>> -> memref<1x128xf32, #tpu.memory_space<any>>
    %c4_i32_55 = arith.constant 4 : i32
    %c0_i32_56 = arith.constant 0 : i32
    %74 = tpu.memref_slice %arg5[%c4_i32_55, %c0_i32_56] : memref<8x128xf32, #tpu.memory_space<vmem>> -> memref<1x128xf32, #tpu.memory_space<vmem>>
    %75 = tpu.memref_slice %arg6[%c4_i32_52] : memref<8x!tpu.dma_semaphore, #tpu.memory_space<semaphore_mem>> -> memref<1x!tpu.dma_semaphore, #tpu.memory_space<semaphore_mem>>
    %76 = tpu.memref_squeeze %75 : memref<1x!tpu.dma_semaphore, #tpu.memory_space<semaphore_mem>> -> memref<!tpu.dma_semaphore, #tpu.memory_space<semaphore_mem>>
    tpu.wait_dma2 semaphore(%76 : memref<!tpu.dma_semaphore, #tpu.memory_space<semaphore_mem>>) src(%73 : memref<1x128xf32, #tpu.memory_space<any>>) dst(%74 : memref<1x128xf32, #tpu.memory_space<vmem>>)
    %c5_i32_57 = arith.constant 5 : i32
    %c0_i32_58 = arith.constant 0 : i32
    %c0_i32_59 = arith.constant 0 : i32
    %77 = tpu.memref_slice %arg2[%c0_i32_58, %c0_i32_59] : memref<64x128xf32, #tpu.memory_space<any>> -> memref<1x128xf32, #tpu.memory_space<any>>
    %c5_i32_60 = arith.constant 5 : i32
    %c0_i32_61 = arith.constant 0 : i32
    %78 = tpu.memref_slice %arg5[%c5_i32_60, %c0_i32_61] : memref<8x128xf32, #tpu.memory_space<vmem>> -> memref<1x128xf32, #tpu.memory_space<vmem>>
    %79 = tpu.memref_slice %arg6[%c5_i32_57] : memref<8x!tpu.dma_semaphore, #tpu.memory_space<semaphore_mem>> -> memref<1x!tpu.dma_semaphore, #tpu.memory_space<semaphore_mem>>
    %80 = tpu.memref_squeeze %79 : memref<1x!tpu.dma_semaphore, #tpu.memory_space<semaphore_mem>> -> memref<!tpu.dma_semaphore, #tpu.memory_space<semaphore_mem>>
    tpu.wait_dma2 semaphore(%80 : memref<!tpu.dma_semaphore, #tpu.memory_space<semaphore_mem>>) src(%77 : memref<1x128xf32, #tpu.memory_space<any>>) dst(%78 : memref<1x128xf32, #tpu.memory_space<vmem>>)
    %c6_i32_62 = arith.constant 6 : i32
    %c0_i32_63 = arith.constant 0 : i32
    %c0_i32_64 = arith.constant 0 : i32
    %81 = tpu.memref_slice %arg2[%c0_i32_63, %c0_i32_64] : memref<64x128xf32, #tpu.memory_space<any>> -> memref<1x128xf32, #tpu.memory_space<any>>
    %c6_i32_65 = arith.constant 6 : i32
    %c0_i32_66 = arith.constant 0 : i32
    %82 = tpu.memref_slice %arg5[%c6_i32_65, %c0_i32_66] : memref<8x128xf32, #tpu.memory_space<vmem>> -> memref<1x128xf32, #tpu.memory_space<vmem>>
    %83 = tpu.memref_slice %arg6[%c6_i32_62] : memref<8x!tpu.dma_semaphore, #tpu.memory_space<semaphore_mem>> -> memref<1x!tpu.dma_semaphore, #tpu.memory_space<semaphore_mem>>
    %84 = tpu.memref_squeeze %83 : memref<1x!tpu.dma_semaphore, #tpu.memory_space<semaphore_mem>> -> memref<!tpu.dma_semaphore, #tpu.memory_space<semaphore_mem>>
    tpu.wait_dma2 semaphore(%84 : memref<!tpu.dma_semaphore, #tpu.memory_space<semaphore_mem>>) src(%81 : memref<1x128xf32, #tpu.memory_space<any>>) dst(%82 : memref<1x128xf32, #tpu.memory_space<vmem>>)
    %c7_i32_67 = arith.constant 7 : i32
    %c0_i32_68 = arith.constant 0 : i32
    %c0_i32_69 = arith.constant 0 : i32
    %85 = tpu.memref_slice %arg2[%c0_i32_68, %c0_i32_69] : memref<64x128xf32, #tpu.memory_space<any>> -> memref<1x128xf32, #tpu.memory_space<any>>
    %c7_i32_70 = arith.constant 7 : i32
    %c0_i32_71 = arith.constant 0 : i32
    %86 = tpu.memref_slice %arg5[%c7_i32_70, %c0_i32_71] : memref<8x128xf32, #tpu.memory_space<vmem>> -> memref<1x128xf32, #tpu.memory_space<vmem>>
    %87 = tpu.memref_slice %arg6[%c7_i32_67] : memref<8x!tpu.dma_semaphore, #tpu.memory_space<semaphore_mem>> -> memref<1x!tpu.dma_semaphore, #tpu.memory_space<semaphore_mem>>
    %88 = tpu.memref_squeeze %87 : memref<1x!tpu.dma_semaphore, #tpu.memory_space<semaphore_mem>> -> memref<!tpu.dma_semaphore, #tpu.memory_space<semaphore_mem>>
    tpu.wait_dma2 semaphore(%88 : memref<!tpu.dma_semaphore, #tpu.memory_space<semaphore_mem>>) src(%85 : memref<1x128xf32, #tpu.memory_space<any>>) dst(%86 : memref<1x128xf32, #tpu.memory_space<vmem>>)
    %c0 = arith.constant 0 : index
    %c0_72 = arith.constant 0 : index
    %89 = vector.load %arg5[%c0, %c0_72] : memref<8x128xf32, #tpu.memory_space<vmem>>, vector<8x128xf32>
    %c0_73 = arith.constant 0 : index
    %c0_74 = arith.constant 0 : index
    %90 = vector.load %arg3[%c0_73, %c0_74] : memref<8x1xf32, #tpu.memory_space<vmem>>, vector<8x1xf32>
    %91 = vector.broadcast %90 : vector<8x1xf32> to vector<8x128xf32>
    %92 = arith.mulf %89, %91 : vector<8x128xf32>
    %c0_75 = arith.constant 0 : index
    %c0_76 = arith.constant 0 : index
    %93 = vector.load %arg4[%c0_75, %c0_76] : memref<8x128xf32, #tpu.memory_space<vmem>>, vector<8x128xf32>
    tpu.vector_store %arg4[%c0_75, %c0_76], %92 {strides = array<i32>} : memref<8x128xf32, #tpu.memory_space<vmem>>, vector<8x128xf32>,
    return
  }
  func.func @transform_1(%arg0: i32, %arg1: memref<16xi32, #tpu.memory_space<smem>>) -> (i32, i32) {
    %c0_i32 = arith.constant 0 : i32
    %c0_i32_0 = arith.constant 0 : i32
    return %arg0, %c0_i32 : i32, i32
  }
  func.func @transform_2(%arg0: i32, %arg1: memref<16xi32, #tpu.memory_space<smem>>) -> (i32, i32) {
    %c0_i32 = arith.constant 0 : i32
    %c0_i32_0 = arith.constant 0 : i32
    return %arg0, %c0_i32 : i32, i32
  }
}

</mosaic_0001>

<llo_original>
// kernel: tpu_custom_call.1
$region0: #{tpu_custom_call.1}
  #allocation0 [shape = 'u32[]', space=smem, size = 0x4, offset = 0x4, fixed_abs, tag = 'smem constant byte address 0x4 - core index']
  #allocation1 [shape = 'u32[144,128]{1,0:T(1,128)}', space=vmem, size = 0x12000, scoped, tag = 'internal scratch']
  #allocation2 [shape = 'f32[8,128]{1,0:T(8,128)}', space=vmem, size = 0x1000, scoped, tag = 'scratch operand']
  #allocation3 [shape = 's32[8]{0}', space=sflag, size = 0x20, scoped, tag = 'scratch operand']
  #allocation4 [shape = 's32[1]{0}', space=sflag, size = 0x4, scoped, tag = 'scoped memory for tpu_custom_call.1']
  #allocation5 [shape = 'u8[512]{0}', space=smem, size = 0x200, scoped, tag = 'prefetched SMEM operand 0']
  #allocation8 [shape = 's32[]', space=sflag, size = 0x4, offset = 0, fixed_abs, tag = 'sflag constant byte address 0x0 - dummy sync flag']
  #allocation9 [shape = 's32[]', space=sflag, size = 0x4, offset = 0, fixed_abs, tag = 'sflag constant byte address 0x0 - dummy sync flag']
  #allocation10 [shape = 'u32[]', space=smem, size = 0x4, offset = 0x44, fixed_abs, tag = 'smem constant byte address 0x44 - assertion arg 0']
  #allocation11 [shape = 'u32[]', space=smem, size = 0x4, offset = 0x48, fixed_abs, tag = 'smem constant byte address 0x48 - assertion arg 1']
  #allocation12 [shape = 's32[]', space=sflag, size = 0x4, offset = 0, fixed_abs, tag = 'sflag constant byte address 0x0 - dummy sync flag']
  #allocation13 [shape = 's32[]', space=sflag, size = 0x4, offset = 0, fixed_abs, tag = 'sflag constant byte address 0x0 - dummy sync flag']
  #allocation14 [shape = 's32[]', space=sflag, size = 0x4, offset = 0, fixed_abs, tag = 'sflag constant byte address 0x0 - dummy sync flag']
  #allocation15 [shape = 's32[]', space=sflag, size = 0x4, offset = 0, fixed_abs, tag = 'sflag constant byte address 0x0 - dummy sync flag']
  #allocation16 [shape = 's32[]', space=sflag, size = 0x4, offset = 0, fixed_abs, tag = 'sflag constant byte address 0x0 - dummy sync flag']
  #allocation17 [shape = 's32[]', space=sflag, size = 0x4, offset = 0, fixed_abs, tag = 'sflag constant byte address 0x0 - dummy sync flag']
  #allocation18 [shape = 's32[]', space=sflag, size = 0x4, offset = 0, fixed_abs, tag = 'sflag constant byte address 0x0 - dummy sync flag']
  #allocation19 [shape = 's32[]', space=sflag, size = 0x4, offset = 0, fixed_abs, tag = 'sflag constant byte address 0x0 - dummy sync flag']
  #allocation20 [shape = 's32[]', space=sflag, size = 0x4, offset = 0, fixed_abs, tag = 'sflag constant byte address 0x0 - dummy sync flag']
  #allocation21 [shape = 's32[]', space=sflag, size = 0x4, offset = 0, fixed_abs, tag = 'sflag constant byte address 0x0 - dummy sync flag']
  #allocation22 [shape = 's32[]', space=sflag, size = 0x4, offset = 0, fixed_abs, tag = 'sflag constant byte address 0x0 - dummy sync flag']
  #allocation23 [shape = 's32[]', space=sflag, size = 0x4, offset = 0, fixed_abs, tag = 'sflag constant byte address 0x0 - dummy sync flag']
  #allocation24 [shape = 's32[]', space=sflag, size = 0x4, offset = 0, fixed_abs, tag = 'sflag constant byte address 0x0 - dummy sync flag']
  #allocation25 [shape = 's32[]', space=sflag, size = 0x4, offset = 0, fixed_abs, tag = 'sflag constant byte address 0x0 - dummy sync flag']
  %s0 = inlined_call_operand.vmem [shape: s32[16], index: 0, kind: input, shape index: {}]
  %s1 = inlined_call_operand.hbm [shape: f32[64,128], index: 1, kind: input, shape index: {}]
  %s2 = inlined_call_operand.vmem [shape: f32[16,1], index: 2, kind: input, shape index: {}]
  %s3 = inlined_call_operand.hbm [shape: f32[16,128], index: 3, kind: output, shape index: {}]
  %s4 = sld [smem:[#allocation0]]
  $region69: #{tpu_custom_call.1} parent=0
    _
  %s6 = ssub.s32 1, %s4
  %s7 = scalar_select 0, %s6, %s4
  %s8 = sshll.u32 %s0, 4
  %s9 = int_to_ptr.vmem [resolvable:$true] %s8
  %11 = dma.vmem_to_smem %s9, 16, [#allocation5], [#allocation4]
  %12 = dma.done [#allocation4], 16
  %13 = sfence
  $region1: #{tpu_custom_call.1} parent=0
    #allocation6 [shape = 'u8[8192]{0}', space=vmem, size = 0x2000, scoped, tag = 'output window, operand 0']
    #allocation7 [shape = 's32[2]{0}', space=sflag, size = 0x8, scoped, tag = 'scoped memory for tpu_custom_call.1']
    %14 = vsyncpa [#allocation7], 0
    %s15 = scalar_lea.sflag [#allocation7], 1
    %16 = vsyncpa %s15, 0
    loop: start=0, step=1, limit=4
    $region2: #{tpu_custom_call.1} parent=1 // loop_pre_header
      _
    $region3: #{tpu_custom_call.1} parent=1 // loop_header
      %s18 = sphi 0, %s22
      %p19 = scmp.ge.s32.totalorder %s18, 4
      %s28 = sphi 0, %s30
      %s31 = sphi 0, %s28
      %s32 = sphi 0, %s31
      %s48 = sphi 0, %s32
      %s54 = sphi 0, %s56
      %s57 = sphi 0, %s54
      %s58 = sphi 0, %s57
      %s74 = sphi 0, %s58
    $region4: #{tpu_custom_call.1} parent=1 // loop_header_branch
      %21 = sbr.rel (%p19) target = $region8
    $region5: #{tpu_custom_call.1} parent=1 // loop_body
      %s23 = ssub.s32 %s18, 1
      %s24 = ssub.s32 %s18, 2
      %s25 = sadd.s32 %s18, 1
      %s26 = ssub.s32 %s18, %s25
      %p27 = scmp.eq.s32.totalorder %s26, 0
      %s29 = sadd.s32 %s28, 1
      %s30 = scalar_select %p27, %s28, %s29
      %p33 = pneg %p27
      %p34 = scmp.eq.s32.totalorder %s18, 1
      %p35 = por %p33, %p34
      %p36 = scmp.ne.s32.totalorder %s28, %s31
      %p37 = scmp.eq.s32.totalorder %s18, 0
      %p38 = por %p36, %p37
      %p39 = scmp.ne.s32.totalorder %s28, %s31
      %p40 = scmp.eq.s32.totalorder %s23, 1
      %p41 = por %p39, %p40
      %p42 = scmp.ne.s32.totalorder %s31, %s32
      %p43 = scmp.eq.s32.totalorder %s23, 0
      %p44 = por %p42, %p43
      %p45 = scmp.ne.s32.totalorder %s31, %s32
      %p46 = scmp.eq.s32.totalorder %s24, 1
      %p47 = por %p45, %p46
      %p49 = scmp.ne.s32.totalorder %s32, %s48
      %p50 = scmp.eq.s32.totalorder %s24, 0
      %p51 = por %p49, %p50
      %s52 = ssub.s32 %s18, %s25
      %p53 = scmp.eq.s32.totalorder %s52, 0
      %s55 = sadd.s32 %s54, 1
      %s56 = scalar_select %p53, %s54, %s55
      %p59 = pneg %p53
      %p60 = scmp.eq.s32.totalorder %s18, 1
      %p61 = por %p59, %p60
      %p62 = scmp.ne.s32.totalorder %s54, %s57
      %p63 = scmp.eq.s32.totalorder %s18, 0
      %p64 = por %p62, %p63
      %p65 = scmp.ne.s32.totalorder %s54, %s57
      %p66 = scmp.eq.s32.totalorder %s23, 1
      %p67 = por %p65, %p66
      %p68 = scmp.ne.s32.totalorder %s57, %s58
      %p69 = scmp.eq.s32.totalorder %s23, 0
      %p70 = por %p68, %p69
      %p71 = scmp.ne.s32.totalorder %s57, %s58
      %p72 = scmp.eq.s32.totalorder %s24, 1
      %p73 = por %p71, %p72
      %p75 = scmp.ne.s32.totalorder %s58, %s74
      %p76 = scmp.eq.s32.totalorder %s24, 0
      %p77 = por %p75, %p76
      %p78 = scmp.le.s32.totalorder 1, %s18
      %p79 = scmp.lt.s32.totalorder %s18, 3
      %p80 = pnand %p78, %p79
      %p81 = pneg %p80
      // Predicated region
      $region9: #{tpu_custom_call.1} parent=5 // pred_check
        _
      $region10: #{tpu_custom_call.1} parent=5 // pred_check_branch
        %83 = sbr.rel (%p80) target = $region12
      $region11: #{tpu_custom_call.1} parent=5 // pred_region
        %s84 = ssub.s32 %s18, 1
      $region12: #{tpu_custom_call.1} parent=5 // pred_fallthru
        _
      %p85 = scmp.lt.s32.totalorder %s18, 2
      // Predicated region
      $region13: #{tpu_custom_call.1} parent=5 // pred_check
        %p86 = pneg %p85
      $region14: #{tpu_custom_call.1} parent=5 // pred_check_branch
        %88 = sbr.rel (%p86) target = $region16
      $region15: #{tpu_custom_call.1} parent=5 // pred_region
        // Predicated region
        $region17: #{tpu_custom_call.1} parent=15 // pred_check
          %p89 = pneg %p38
        $region18: #{tpu_custom_call.1} parent=15 // pred_check_branch
          %91 = sbr.rel (%p89) target = $region20
        $region19: #{tpu_custom_call.1} parent=15 // pred_region
          %p92 = scmp.lt.s32.totalorder %s18, 1
          %s93 = scalar_select %p92, %s18, 1
          %s94 = smul.addr %s93, 8
          %s95 = scalar_lea.vmem %s2, %s94
        $region20: #{tpu_custom_call.1} parent=15 // pred_fallthru
          _
      $region16: #{tpu_custom_call.1} parent=5 // pred_fallthru
        _
      %p96 = scmp.le.s32.totalorder 1, %s18
      %p97 = scmp.lt.s32.totalorder %s18, 3
      %p98 = pnand %p96, %p97
      %p99 = pneg %p98
      // Predicated region
      $region21: #{tpu_custom_call.1} parent=5 // pred_check
        _
      $region22: #{tpu_custom_call.1} parent=5 // pred_check_branch
        %101 = sbr.rel (%p98) target = $region24
      $region23: #{tpu_custom_call.1} parent=5 // pred_region
        %s102 = ssub.s32 %s18, 1
        %p103 = scmp.lt.s32.totalorder %s23, 1
        %s104 = scalar_select %p103, %s23, 1
        %s105 = smul.addr %s104, 8
        %s106 = scalar_lea.vmem %s2, %s105
        %p107 = pneg %p44
        %p108 = pneg %p41
        %p109 = pneg %p70
        %p110 = pneg %p67
        %s111 = sand.u32 %s57, 1
        %s112 = scalar_lea.sflag [#allocation7], %s111
        %s113 = sand.u32 %s57, 1
        %s114 = smul.addr %s113, 8
        %s115 = scalar_lea.vmem [#allocation6], %s114
        %p116 = scmp.lt.s32.totalorder %s23, 1
        %s117 = scalar_select %p116, %s23, 1
        %s118 = smul.addr %s117, 8
        %s119 = scalar_lea.vmem %s2, %s118
        %s120 = smul.u32 %s23, 8
        %s121 = sld [smem:[#allocation5 + %s120]]
        %s122 = smul.addr %s121, 16
        %s123 = scalar_lea.hbm %s1, %s122
        // Predicated region
        $region25: #{tpu_custom_call.1} parent=23 // pred_check
          _
        $region26: #{tpu_custom_call.1} parent=23 // pred_check_branch
          %125 = sbr.rel target = $region28
        $region27: #{tpu_custom_call.1} parent=23 // pred_region
          %126 = sst [smem:[#allocation10]] [#allocation9]
          %127 = sst [smem:[#allocation11]] [#allocation8]
        $region28: #{tpu_custom_call.1} parent=23 // pred_fallthru
          _
        %129 = shalt.err (0)
        %s131 = sshll.u32 [#allocation2], 4
        %s132 = int_to_ptr.vmem [resolvable:$true] %s131
        %134 = dma.hbm_to_vmem [thread:$0]  %s123, 16, %s132, [#allocation3]
        %s135 = sadd.s32 %s120, 1
        %s136 = sld [smem:[#allocation5 + %s135]]
        %s137 = smul.addr %s136, 16
        %s138 = scalar_lea.hbm %s1, %s137
        %s139 = scalar_lea.vmem [#allocation2], 1
        %s140 = scalar_lea.sflag [#allocation3], 1
        // Predicated region
        $region29: #{tpu_custom_call.1} parent=23 // pred_check
          _
        $region30: #{tpu_custom_call.1} parent=23 // pred_check_branch
          %142 = sbr.rel target = $region32
        $region31: #{tpu_custom_call.1} parent=23 // pred_region
          %143 = sst [smem:[#allocation10]] [#allocation13]
          %144 = sst [smem:[#allocation11]] [#allocation12]
        $region32: #{tpu_custom_call.1} parent=23 // pred_fallthru
          _
        %146 = shalt.err (0)
        %s148 = sshll.u32 %s139, 4
        %s149 = int_to_ptr.vmem [resolvable:$true] %s148
        %151 = dma.hbm_to_vmem [thread:$0]  %s138, 16, %s149, %s140
        %s152 = sadd.s32 %s120, 2
        %s153 = sld [smem:[#allocation5 + %s152]]
        %s154 = smul.addr %s153, 16
        %s155 = scalar_lea.hbm %s1, %s154
        %s156 = scalar_lea.vmem [#allocation2], 2
        %s157 = scalar_lea.sflag [#allocation3], 2
        // Predicated region
        $region33: #{tpu_custom_call.1} parent=23 // pred_check
          _
        $region34: #{tpu_custom_call.1} parent=23 // pred_check_branch
          %159 = sbr.rel target = $region36
        $region35: #{tpu_custom_call.1} parent=23 // pred_region
          %160 = sst [smem:[#allocation10]] [#allocation15]
          %161 = sst [smem:[#allocation11]] [#allocation14]
        $region36: #{tpu_custom_call.1} parent=23 // pred_fallthru
          _
        %163 = shalt.err (0)
        %s165 = sshll.u32 %s156, 4
        %s166 = int_to_ptr.vmem [resolvable:$true] %s165
        %168 = dma.hbm_to_vmem [thread:$0]  %s155, 16, %s166, %s157
        %s169 = sadd.s32 %s120, 3
        %s170 = sld [smem:[#allocation5 + %s169]]
        %s171 = smul.addr %s170, 16
        %s172 = scalar_lea.hbm %s1, %s171
        %s173 = scalar_lea.vmem [#allocation2], 3
        %s174 = scalar_lea.sflag [#allocation3], 3
        // Predicated region
        $region37: #{tpu_custom_call.1} parent=23 // pred_check
          _
        $region38: #{tpu_custom_call.1} parent=23 // pred_check_branch
          %176 = sbr.rel target = $region40
        $region39: #{tpu_custom_call.1} parent=23 // pred_region
          %177 = sst [smem:[#allocation10]] [#allocation17]
          %178 = sst [smem:[#allocation11]] [#allocation16]
        $region40: #{tpu_custom_call.1} parent=23 // pred_fallthru
          _
        %180 = shalt.err (0)
        %s182 = sshll.u32 %s173, 4
        %s183 = int_to_ptr.vmem [resolvable:$true] %s182
        %185 = dma.hbm_to_vmem [thread:$0]  %s172, 16, %s183, %s174
        %s186 = sadd.s32 %s120, 4
        %s187 = sld [smem:[#allocation5 + %s186]]
        %s188 = smul.addr %s187, 16
        %s189 = scalar_lea.hbm %s1, %s188
        %s190 = scalar_lea.vmem [#allocation2], 4
        %s191 = scalar_lea.sflag [#allocation3], 4
        // Predicated region
        $region41: #{tpu_custom_call.1} parent=23 // pred_check
          _
        $region42: #{tpu_custom_call.1} parent=23 // pred_check_branch
          %193 = sbr.rel target = $region44
        $region43: #{tpu_custom_call.1} parent=23 // pred_region
          %194 = sst [smem:[#allocation10]] [#allocation19]
          %195 = sst [smem:[#allocation11]] [#allocation18]
        $region44: #{tpu_custom_call.1} parent=23 // pred_fallthru
          _
        %197 = shalt.err (0)
        %s199 = sshll.u32 %s190, 4
        %s200 = int_to_ptr.vmem [resolvable:$true] %s199
        %202 = dma.hbm_to_vmem [thread:$0]  %s189, 16, %s200, %s191
        %s203 = sadd.s32 %s120, 5
        %s204 = sld [smem:[#allocation5 + %s203]]
        %s205 = smul.addr %s204, 16
        %s206 = scalar_lea.hbm %s1, %s205
        %s207 = scalar_lea.vmem [#allocation2], 5
        %s208 = scalar_lea.sflag [#allocation3], 5
        // Predicated region
        $region45: #{tpu_custom_call.1} parent=23 // pred_check
          _
        $region46: #{tpu_custom_call.1} parent=23 // pred_check_branch
          %210 = sbr.rel target = $region48
        $region47: #{tpu_custom_call.1} parent=23 // pred_region
          %211 = sst [smem:[#allocation10]] [#allocation21]
          %212 = sst [smem:[#allocation11]] [#allocation20]
        $region48: #{tpu_custom_call.1} parent=23 // pred_fallthru
          _
        %214 = shalt.err (0)
        %s216 = sshll.u32 %s207, 4
        %s217 = int_to_ptr.vmem [resolvable:$true] %s216
        %219 = dma.hbm_to_vmem [thread:$0]  %s206, 16, %s217, %s208
        %s220 = sadd.s32 %s120, 6
        %s221 = sld [smem:[#allocation5 + %s220]]
        %s222 = smul.addr %s221, 16
        %s223 = scalar_lea.hbm %s1, %s222
        %s224 = scalar_lea.vmem [#allocation2], 6
        %s225 = scalar_lea.sflag [#allocation3], 6
        // Predicated region
        $region49: #{tpu_custom_call.1} parent=23 // pred_check
          _
        $region50: #{tpu_custom_call.1} parent=23 // pred_check_branch
          %227 = sbr.rel target = $region52
        $region51: #{tpu_custom_call.1} parent=23 // pred_region
          %228 = sst [smem:[#allocation10]] [#allocation23]
          %229 = sst [smem:[#allocation11]] [#allocation22]
        $region52: #{tpu_custom_call.1} parent=23 // pred_fallthru
          _
        %231 = shalt.err (0)
        %s233 = sshll.u32 %s224, 4
        %s234 = int_to_ptr.vmem [resolvable:$true] %s233
        %236 = dma.hbm_to_vmem [thread:$0]  %s223, 16, %s234, %s225
        %s237 = sadd.s32 %s120, 7
        %s238 = sld [smem:[#allocation5 + %s237]]
        %s239 = smul.addr %s238, 16
        %s240 = scalar_lea.hbm %s1, %s239
        %s241 = scalar_lea.vmem [#allocation2], 7
        %s242 = scalar_lea.sflag [#allocation3], 7
        // Predicated region
        $region53: #{tpu_custom_call.1} parent=23 // pred_check
          _
        $region54: #{tpu_custom_call.1} parent=23 // pred_check_branch
          %244 = sbr.rel target = $region56
        $region55: #{tpu_custom_call.1} parent=23 // pred_region
          %245 = sst [smem:[#allocation10]] [#allocation25]
          %246 = sst [smem:[#allocation11]] [#allocation24]
        $region56: #{tpu_custom_call.1} parent=23 // pred_fallthru
          _
        %248 = shalt.err (0)
        %s250 = sshll.u32 %s241, 4
        %s251 = int_to_ptr.vmem [resolvable:$true] %s250
        %253 = dma.hbm_to_vmem [thread:$0]  %s240, 16, %s251, %s242
        %s254 = smul.u32 1, 1
        %s255 = sshll.u32 %s254, 4
        %256 = dma.done [#allocation3], %s255
        %s257 = sshll.u32 %s254, 4
        %258 = dma.done %s140, %s257
        %s259 = sshll.u32 %s254, 4
        %260 = dma.done %s157, %s259
        %s261 = sshll.u32 %s254, 4
        %262 = dma.done %s174, %s261
        %s263 = sshll.u32 %s254, 4
        %264 = dma.done %s191, %s263
        %s265 = sshll.u32 %s254, 4
        %266 = dma.done %s208, %s265
        %s267 = sshll.u32 %s254, 4
        %268 = dma.done %s225, %s267
        %s269 = sshll.u32 %s254, 4
        %270 = dma.done %s242, %s269
        %v271 = vld [vmem:[#allocation2] sm:$0xff]
        %v272 = vld [vmem:[%s119] sm:$0xff]
        %274 = vset.pattern.permute.xlu0 0
        %275 = vperm.xlu0 %274, %v272
        %v276 = vpop.permute.xlu0 %275
        %v278 = vmul.f32 %v271, %v276
        %279 = vst [vmem:[%s115] sm:$0xff] %v278
        %s280 = sand.u32 %s57, 1
        %s281 = scalar_lea.sflag [#allocation7], %s280
        %s282 = sand.u32 %s57, 1
        %s283 = smul.addr %s282, 8
        %s284 = scalar_lea.vmem [#allocation6], %s283
        // Predicated region
        $region57: #{tpu_custom_call.1} parent=23 // pred_check
          %p285 = pneg %p67
        $region58: #{tpu_custom_call.1} parent=23 // pred_check_branch
          %287 = sbr.rel (%p285) target = $region60
        $region59: #{tpu_custom_call.1} parent=23 // pred_region
          %s289 = ssub.s32 128, 128
          %290 = vsyncadd %s281, %s289
          %s291 = smul.addr %s23, 128
          %s292 = scalar_lea.hbm %s3, %s291
          %s294 = sshll.u32 %s284, 4
          %s295 = int_to_ptr.vmem [resolvable:$true] %s294
          %297 = dma.vmem_to_hbm [thread:$0]  %s295, 128, %s292, %s281
        $region60: #{tpu_custom_call.1} parent=23 // pred_fallthru
          _
      $region24: #{tpu_custom_call.1} parent=5 // pred_fallthru
        _
      %p298 = scmp.le.s32.totalorder 2, %s18
      // Predicated region
      $region61: #{tpu_custom_call.1} parent=5 // pred_check
        %p299 = pneg %p298
      $region62: #{tpu_custom_call.1} parent=5 // pred_check_branch
        %301 = sbr.rel (%p299) target = $region64
      $region63: #{tpu_custom_call.1} parent=5 // pred_region
        %s302 = ssub.s32 %s18, 2
        // Predicated region
        $region65: #{tpu_custom_call.1} parent=63 // pred_check
          %p303 = pneg %p73
        $region66: #{tpu_custom_call.1} parent=63 // pred_check_branch
          %305 = sbr.rel (%p303) target = $region68
        $region67: #{tpu_custom_call.1} parent=63 // pred_region
          %s306 = sand.u32 %s58, 1
          %s307 = scalar_lea.sflag [#allocation7], %s306
          %s308 = sand.u32 %s58, 1
          %s309 = smul.addr %s308, 8
          %s310 = scalar_lea.vmem [#allocation6], %s309
          %311 = dma.done %s307, 128
        $region68: #{tpu_custom_call.1} parent=63 // pred_fallthru
          _
      $region64: #{tpu_custom_call.1} parent=5 // pred_fallthru
        _
    $region6: #{tpu_custom_call.1} parent=1 // loop_footer
      %s22 = sadd.s32 1, %s18
    $region7: #{tpu_custom_call.1} parent=1 // loop_footer_branch
      %17 = sbr.rel target = $region3
    $region8: #{tpu_custom_call.1} parent=1 // loop_exit
      _
    %312 = vsyncpa [#allocation7], 1
    %s313 = scalar_lea.sflag [#allocation7], 1
    %314 = vsyncpa %s313, 1
  %315 = vsyncmov [#allocation3]
  %s316 = vpop.sfrf %315
  %p317 = scmp.eq.s32.totalorder %s316, 0
  %p318 = pneg %p317
  %320 = shalt.err (%p318)
  %s321 = scalar_lea.sflag [#allocation3], 1
  %322 = vsyncmov %s321
  %s323 = vpop.sfrf %322
  %p324 = scmp.eq.s32.totalorder %s323, 0
  %p325 = pneg %p324
  %327 = shalt.err (%p325)
  %s328 = scalar_lea.sflag [#allocation3], 2
  %329 = vsyncmov %s328
  %s330 = vpop.sfrf %329
  %p331 = scmp.eq.s32.totalorder %s330, 0
  %p332 = pneg %p331
  %334 = shalt.err (%p332)
  %s335 = scalar_lea.sflag [#allocation3], 3
  %336 = vsyncmov %s335
  %s337 = vpop.sfrf %336
  %p338 = scmp.eq.s32.totalorder %s337, 0
  %p339 = pneg %p338
  %341 = shalt.err (%p339)
  %s342 = scalar_lea.sflag [#allocation3], 4
  %343 = vsyncmov %s342
  %s344 = vpop.sfrf %343
  %p345 = scmp.eq.s32.totalorder %s344, 0
  %p346 = pneg %p345
  %348 = shalt.err (%p346)
  %s349 = scalar_lea.sflag [#allocation3], 5
  %350 = vsyncmov %s349
  %s351 = vpop.sfrf %350
  %p352 = scmp.eq.s32.totalorder %s351, 0
  %p353 = pneg %p352
  %355 = shalt.err (%p353)
  %s356 = scalar_lea.sflag [#allocation3], 6
  %357 = vsyncmov %s356
  %s358 = vpop.sfrf %357
  %p359 = scmp.eq.s32.totalorder %s358, 0
  %p360 = pneg %p359
  %362 = shalt.err (%p360)
  %s363 = scalar_lea.sflag [#allocation3], 7
  %364 = vsyncmov %s363
  %s365 = vpop.sfrf %364
  %p366 = scmp.eq.s32.totalorder %s365, 0
  %p367 = pneg %p366
  %369 = shalt.err (%p367)

</llo_original>
